<compile_context>
chip_gen: v6e
topology: v6e:2x2x1
jax: 0.10.0
libtpu: 0.0.40
codegen_flags: <defaults>
</compile_context>

<pallas_src>
import functools

import jax
import jax.numpy as jnp
from jax.experimental import pallas as pl
from jax.experimental.pallas import tpu as pltpu

INPUT_DIM = 32
H1 = 80
H2 = 10
OUT = 1
H1_PAD = 128   # 80 -> 128 lanes
H2_PAD = 128   # 10 -> 128 lanes


def _round_up(x: int, m: int) -> int:
    return ((x + m - 1) // m) * m


def _choose_tile_n(n: int) -> int:
    """Row-tile policy: big tiles to amortize the ~0.35 us/step grid overhead, but >= 2
    grid steps for medium batches so v7x's two TensorCores both get work on the
    'parallel' grid axis. Per-tile VMEM at 4096 rows is ~7 MB (see header comment)."""
    if n <= 1024:
        return n                                   # one block == full row extent (always legal)
    if n <= 8192:
        return _round_up(pl.cdiv(n, 2), 128)       # exactly-ish two row tiles
    return 4096                                    # large-N steady state


def mlp_kernel(x_ref, w1_ref, b1_ref, w2_ref, b2_ref, w3r_ref, b3_ref, o_ref):
    # All three layers fused; MXU matmuls in bf16 with f32 accumulation, bias/ReLU in f32.
    x = x_ref[...].astype(jnp.bfloat16)                                  # cast in VMEM (no extra HBM pass)
    h1 = jnp.dot(x, w1_ref[...], preferred_element_type=jnp.float32) + b1_ref[...]
    h1 = jnp.maximum(h1, 0.0)                                            # (tile_n, 128) f32
    # TODO(synk): dropout omitted (identity at inference; training-mode RNG mask not modeled)
    h2 = jnp.dot(h1.astype(jnp.bfloat16), w2_ref[...],
                 preferred_element_type=jnp.float32) + b2_ref[...]
    h2 = jnp.maximum(h2, 0.0)                                            # (tile_n, 128) f32
    # Final layer has a single output feature: use VPU mult + XLU lane reduction
    # instead of an N=1 MXU pass (frees the MXU push slot / result FIFO pop).
    o_ref[...] = jnp.sum(h2 * w3r_ref[...], axis=-1, keepdims=True) + b3_ref[...]


@functools.partial(jax.jit, static_argnames=("tile_n",))
def mlp_classifier_forward(x, w1, b1, w2, b2, w3_row, b3, *, tile_n=None):
    """x: (..., input_dim) -> (..., 1) float32.  Params must be packed via pack_params."""
    lead_shape = x.shape[:-1]
    d = x.shape[-1]
    x2d = x.reshape(-1, d)
    n = x2d.shape[0]
    if n == 0:                                    # empty batch guard (0-length grid)
        return jnp.zeros((*lead_shape, OUT), jnp.float32)

    if tile_n is None:
        tile_n = _choose_tile_n(n)
    grid = (pl.cdiv(n, tile_n),)                  # partial last block is masked by Pallas
    h1p, h2p = w1.shape[1], w2.shape[1]

    flops = 2 * n * (d * h1p + h1p * h2p + h2p)
    bytes_accessed = int(
        n * d * jnp.dtype(x2d.dtype).itemsize
        + n * OUT * 4
        + sum(int(a.size) * jnp.dtype(a.dtype).itemsize
              for a in (w1, b1, w2, b2, w3_row, b3)))

    out = pl.pallas_call(
        mlp_kernel,
        out_shape=jax.ShapeDtypeStruct((n, OUT), jnp.float32),
        grid_spec=pltpu.PrefetchScalarGridSpec(
            num_scalar_prefetch=0,
            grid=grid,
            in_specs=[
                # activations tiled over rows; weights/biases resident (constant index_map)
                pl.BlockSpec((tile_n, d), lambda i: (i, 0)),
                pl.BlockSpec((d, h1p), lambda i: (0, 0)),
                pl.BlockSpec((1, h1p), lambda i: (0, 0)),
                pl.BlockSpec((h1p, h2p), lambda i: (0, 0)),
                pl.BlockSpec((1, h2p), lambda i: (0, 0)),
                pl.BlockSpec((1, h2p), lambda i: (0, 0)),   # w3 stored as a row vector
                pl.BlockSpec((1, OUT), lambda i: (0, 0)),
            ],
            out_specs=pl.BlockSpec((tile_n, OUT), lambda i: (i, 0)),
        ),
        compiler_params=pltpu.CompilerParams(
            dimension_semantics=("parallel",),
            vmem_limit_bytes=32 * 1024 * 1024),
        cost_estimate=pl.CostEstimate(flops=flops, transcendentals=0,
                                      bytes_accessed=bytes_accessed),
    )(x2d, w1, b1, w2, b2, w3_row, b3)

    return out.reshape(*lead_shape, OUT)


def init_params(key, input_dim):
    """Deterministic init mimicking nn.Linear (uniform +-1/sqrt(fan_in)).
    Returns raw (unpadded, f32) params in (in_features, out_features) layout."""
    ks = jax.random.split(key, 6)

    def linear(kw, kb, fan_in, fan_out):
        bound = 1.0 / (float(fan_in) ** 0.5)
        w = jax.random.uniform(kw, (fan_in, fan_out), jnp.float32, -bound, bound)
        b = jax.random.uniform(kb, (1, fan_out), jnp.float32, -bound, bound)
        return w, b

    w1, b1 = linear(ks[0], ks[1], input_dim, H1)
    w2, b2 = linear(ks[2], ks[3], H1, H2)
    w3, b3 = linear(ks[4], ks[5], H2, OUT)
    return w1, b1, w2, b2, w3, b3


def pack_params(w1, b1, w2, b2, w3, b3, *, matmul_dtype=jnp.bfloat16):
    """One-time packing: zero-pad hidden dims to 128 lanes, cast the matmul weights to
    bf16 for the MXU, and store w3 as a (1, 128) f32 row vector (used on the VPU)."""
    w1p = jnp.zeros((w1.shape[0], H1_PAD), jnp.float32).at[:, :H1].set(w1).astype(matmul_dtype)
    b1p = jnp.zeros((1, H1_PAD), jnp.float32).at[:, :H1].set(b1.reshape(1, -1))
    w2p = jnp.zeros((H1_PAD, H2_PAD), jnp.float32).at[:H1, :H2].set(w2).astype(matmul_dtype)
    b2p = jnp.zeros((1, H2_PAD), jnp.float32).at[:, :H2].set(b2.reshape(1, -1))
    w3p = jnp.zeros((1, H2_PAD), jnp.float32).at[:, :H2].set(w3.reshape(1, -1))
    b3p = jnp.asarray(b3, jnp.float32).reshape(1, 1)
    return w1p, b1p, w2p, b2p, w3p, b3p


def reference_forward(x, w1, b1, w2, b2, w3, b3):
    """Plain-JAX reference using the same bf16 matmul operands as the kernel."""
    xb = x.astype(jnp.bfloat16)
    w1b = w1.astype(jnp.bfloat16)
    h = jnp.maximum(jnp.dot(xb, w1b, preferred_element_type=jnp.float32) + b1, 0.0)
    w2b = w2.astype(jnp.bfloat16)
    h = jnp.maximum(jnp.dot(h.astype(jnp.bfloat16), w2b,
                            preferred_element_type=jnp.float32) + b2, 0.0)
    return jnp.dot(h, w3, preferred_element_type=jnp.float32) + b3


if __name__ == "__main__":
    key = jax.random.PRNGKey(0)
    kx, kp, kbig, khuge = jax.random.split(key, 4)

    raw_params = init_params(kp, INPUT_DIM)
    packed = pack_params(*raw_params)

    # --- small case with leading dims (exercises the (*, input_dim) handling) ---
    x = jax.random.normal(kx, (2, 4, INPUT_DIM), dtype=jnp.float32)
    out = jax.block_until_ready(mlp_classifier_forward(x, *packed))
    assert out.shape == (2, 4, 1), out.shape
    ref = reference_forward(x, *raw_params)
    assert jnp.allclose(out, ref, atol=2e-3, rtol=2e-3), float(jnp.max(jnp.abs(out - ref)))

    # --- medium, non-tile-divisible batch (multi-step grid + masked partial last block,
    #     i.e. the no-jnp.pad path) ---
    x_big = jax.random.normal(kbig, (1000, INPUT_DIM), dtype=jnp.float32)
    out_big = jax.block_until_ready(mlp_classifier_forward(x_big, *packed))
    assert out_big.shape == (1000, 1), out_big.shape
    ref_big = reference_forward(x_big, *raw_params)
    assert jnp.allclose(out_big, ref_big, atol=2e-3, rtol=2e-3), \
        float(jnp.max(jnp.abs(out_big - ref_big)))

    # --- large batch (exercises the 4096-row steady-state tile path) ---
    x_huge = jax.random.normal(khuge, (10000, INPUT_DIM), dtype=jnp.float32)
    out_huge = jax.block_until_ready(mlp_classifier_forward(x_huge, *packed))
    assert out_huge.shape == (10000, 1), out_huge.shape
    ref_huge = reference_forward(x_huge, *raw_params)
    assert jnp.allclose(out_huge, ref_huge, atol=2e-3, rtol=2e-3), \
        float(jnp.max(jnp.abs(out_huge - ref_huge)))

    print("KERNEL_OK")
</pallas_src>

<mosaic_0001>
module attributes {stable_mosaic.version = 11 : i64} {
  func.func @mlp_kernel(%arg0: i32, %arg1: memref<8x32xf32, #tpu.memory_space<vmem>>, %arg2: memref<32x128xbf16, #tpu.memory_space<vmem>>, %arg3: memref<1x128xf32, #tpu.memory_space<vmem>>, %arg4: memref<128x128xbf16, #tpu.memory_space<vmem>>, %arg5: memref<1x128xf32, #tpu.memory_space<vmem>>, %arg6: memref<1x128xf32, #tpu.memory_space<vmem>>, %arg7: memref<1x1xf32, #tpu.memory_space<vmem>>, %arg8: memref<8x1xf32, #tpu.memory_space<vmem>>) attributes {dimension_semantics = [#tpu.dimension_semantics<parallel>], iteration_bounds = array<i64: 1>, scalar_prefetch = 0 : i64, scratch_operands = 0 : i64, tpu.core_type = #tpu.core_type<tc>, window_params = [{transform_indices = @transform_0, window_bounds = array<i64: 8, 32>}, {pipeline_mode = #tpu.pipeline_mode<synchronous>, transform_indices = @transform_1, window_bounds = array<i64: 32, 128>}, {pipeline_mode = #tpu.pipeline_mode<synchronous>, transform_indices = @transform_2, window_bounds = array<i64: 1, 128>}, {pipeline_mode = #tpu.pipeline_mode<synchronous>, transform_indices = @transform_3, window_bounds = array<i64: 128, 128>}, {pipeline_mode = #tpu.pipeline_mode<synchronous>, transform_indices = @transform_4, window_bounds = array<i64: 1, 128>}, {pipeline_mode = #tpu.pipeline_mode<synchronous>, transform_indices = @transform_5, window_bounds = array<i64: 1, 128>}, {pipeline_mode = #tpu.pipeline_mode<synchronous>, transform_indices = @transform_6, window_bounds = array<i64: 1, 1>}, {transform_indices = @transform_7, window_bounds = array<i64: 8, 1>}]} {
    %c0 = arith.constant 0 : index
    %c0_0 = arith.constant 0 : index
    %0 = vector.load %arg1[%c0, %c0_0] : memref<8x32xf32, #tpu.memory_space<vmem>>, vector<8x32xf32>
    %1 = arith.truncf %0 : vector<8x32xf32> to vector<8x32xbf16>
    %c0_1 = arith.constant 0 : index
    %c0_2 = arith.constant 0 : index
    %2 = vector.load %arg2[%c0_1, %c0_2] : memref<32x128xbf16, #tpu.memory_space<vmem>>, vector<32x128xbf16>
    %cst = arith.constant dense<0.000000e+00> : vector<8x128xf32>
    %3 = tpu.matmul %1, %2, %cst {dimension_numbers = #tpu.dot_dimension_numbers<[1], [0], [0], [1], [0, 0, 1, 1], [], []>} : vector<8x32xbf16>, vector<32x128xbf16>, vector<8x128xf32> -> vector<8x128xf32>
    %c0_3 = arith.constant 0 : index
    %c0_4 = arith.constant 0 : index
    %4 = vector.load %arg3[%c0_3, %c0_4] : memref<1x128xf32, #tpu.memory_space<vmem>>, vector<1x128xf32>
    %5 = vector.broadcast %4 : vector<1x128xf32> to vector<8x128xf32>
    %6 = arith.addf %3, %5 : vector<8x128xf32>
    %cst_5 = arith.constant 0.000000e+00 : f32
    %7 = vector.broadcast %cst_5 : f32 to vector<8x128xf32>
    %8 = arith.maximumf %6, %7 : vector<8x128xf32>
    %9 = arith.truncf %8 : vector<8x128xf32> to vector<8x128xbf16>
    %c0_6 = arith.constant 0 : index
    %c0_7 = arith.constant 0 : index
    %10 = vector.load %arg4[%c0_6, %c0_7] : memref<128x128xbf16, #tpu.memory_space<vmem>>, vector<128x128xbf16>
    %cst_8 = arith.constant dense<0.000000e+00> : vector<8x128xf32>
    %11 = tpu.matmul %9, %10, %cst_8 {dimension_numbers = #tpu.dot_dimension_numbers<[1], [0], [0], [1], [0, 0, 1, 1], [], []>} : vector<8x128xbf16>, vector<128x128xbf16>, vector<8x128xf32> -> vector<8x128xf32>
    %c0_9 = arith.constant 0 : index
    %c0_10 = arith.constant 0 : index
    %12 = vector.load %arg5[%c0_9, %c0_10] : memref<1x128xf32, #tpu.memory_space<vmem>>, vector<1x128xf32>
    %13 = vector.broadcast %12 : vector<1x128xf32> to vector<8x128xf32>
    %14 = arith.addf %11, %13 : vector<8x128xf32>
    %cst_11 = arith.constant 0.000000e+00 : f32
    %15 = vector.broadcast %cst_11 : f32 to vector<8x128xf32>
    %16 = arith.maximumf %14, %15 : vector<8x128xf32>
    %c0_12 = arith.constant 0 : index
    %c0_13 = arith.constant 0 : index
    %17 = vector.load %arg6[%c0_12, %c0_13] : memref<1x128xf32, #tpu.memory_space<vmem>>, vector<1x128xf32>
    %18 = vector.broadcast %17 : vector<1x128xf32> to vector<8x128xf32>
    %19 = arith.mulf %16, %18 : vector<8x128xf32>
    %cst_14 = arith.constant dense<0.000000e+00> : vector<8xf32>
    %20 = vector.multi_reduction <add>, %19, %cst_14 [1] : vector<8x128xf32> to vector<8xf32>
    %21 = vector.shape_cast %20 : vector<8xf32> to vector<8x1xf32>
    %c0_15 = arith.constant 0 : index
    %c0_16 = arith.constant 0 : index
    %22 = vector.load %arg7[%c0_15, %c0_16] : memref<1x1xf32, #tpu.memory_space<vmem>>, vector<1x1xf32>
    %23 = vector.broadcast %22 : vector<1x1xf32> to vector<8x1xf32>
    %24 = arith.addf %21, %23 : vector<8x1xf32>
    %c0_17 = arith.constant 0 : index
    %c0_18 = arith.constant 0 : index
    %25 = vector.load %arg8[%c0_17, %c0_18] : memref<8x1xf32, #tpu.memory_space<vmem>>, vector<8x1xf32>
    tpu.vector_store %arg8[%c0_17, %c0_18], %24 {strides = array<i32>} : memref<8x1xf32, #tpu.memory_space<vmem>>, vector<8x1xf32>,
    return
  }
  func.func @transform_0(%arg0: i32) -> (i32, i32) {
    %c0_i32 = arith.constant 0 : i32
    %c0_i32_0 = arith.constant 0 : i32
    return %arg0, %c0_i32 : i32, i32
  }
  func.func @transform_1(%arg0: i32) -> (i32, i32) {
    %c0_i32 = arith.constant 0 : i32
    %c0_i32_0 = arith.constant 0 : i32
    %c0_i32_1 = arith.constant 0 : i32
    return %c0_i32, %c0_i32_0 : i32, i32
  }
  func.func @transform_2(%arg0: i32) -> (i32, i32) {
    %c0_i32 = arith.constant 0 : i32
    %c0_i32_0 = arith.constant 0 : i32
    %c0_i32_1 = arith.constant 0 : i32
    return %c0_i32, %c0_i32_0 : i32, i32
  }
  func.func @transform_3(%arg0: i32) -> (i32, i32) {
    %c0_i32 = arith.constant 0 : i32
    %c0_i32_0 = arith.constant 0 : i32
    %c0_i32_1 = arith.constant 0 : i32
    return %c0_i32, %c0_i32_0 : i32, i32
  }
  func.func @transform_4(%arg0: i32) -> (i32, i32) {
    %c0_i32 = arith.constant 0 : i32
    %c0_i32_0 = arith.constant 0 : i32
    %c0_i32_1 = arith.constant 0 : i32
    return %c0_i32, %c0_i32_0 : i32, i32
  }
  func.func @transform_5(%arg0: i32) -> (i32, i32) {
    %c0_i32 = arith.constant 0 : i32
    %c0_i32_0 = arith.constant 0 : i32
    %c0_i32_1 = arith.constant 0 : i32
    return %c0_i32, %c0_i32_0 : i32, i32
  }
  func.func @transform_6(%arg0: i32) -> (i32, i32) {
    %c0_i32 = arith.constant 0 : i32
    %c0_i32_0 = arith.constant 0 : i32
    %c0_i32_1 = arith.constant 0 : i32
    return %c0_i32, %c0_i32_0 : i32, i32
  }
  func.func @transform_7(%arg0: i32) -> (i32, i32) {
    %c0_i32 = arith.constant 0 : i32
    %c0_i32_0 = arith.constant 0 : i32
    return %arg0, %c0_i32 : i32, i32
  }
}

</mosaic_0001>

<llo_original>
// kernel: mlp_classifier_forward.1
$region0: #{mlp_classifier_forward.1}
  #allocation0 [shape = 'u32[]', space=smem, size = 0x4, offset = 0x4, fixed_abs, tag = 'smem constant byte address 0x4 - core index']
  #allocation1 [shape = 'u32[144,128]{1,0:T(1,128)}', space=vmem, size = 0x12000, scoped, tag = 'internal scratch']
  #allocation2 [shape = 'f32[1,1]{1,0:T(1,128)S(1)}', space=vmem, size = 0x200, scoped, tag = 'scoped memory for mlp_classifier_forward.1']
  %s0 = inlined_call_operand.hbm [shape: f32[8,32], index: 0, kind: input, shape index: {}]
  %s1 = inlined_call_operand.hbm [shape: bf16[32,128], index: 1, kind: input, shape index: {}]
  %s2 = inlined_call_operand.vmem [shape: f32[1,128], index: 2, kind: input, shape index: {}]
  %s3 = inlined_call_operand.hbm [shape: bf16[128,128], index: 3, kind: input, shape index: {}]
  %s4 = inlined_call_operand.vmem [shape: f32[1,128], index: 4, kind: input, shape index: {}]
  %s5 = inlined_call_operand.vmem [shape: f32[1,128], index: 5, kind: input, shape index: {}]
  %s6 = inlined_call_operand.<no memory space> [shape: f32[1,1], index: 6, kind: input, shape index: {}]
  %s7 = inlined_call_operand.vmem [shape: f32[8,1], index: 7, kind: output, shape index: {}]
  %s8 = sld [smem:[#allocation0]]
  $region50: #{mlp_classifier_forward.1} parent=0
    _
  %s10 = ssub.s32 1, %s8
  %s11 = scalar_select 0, %s10, %s8
  %v12 = vstv %s6
  %13 = vst [vmem:[#allocation2] sm:$0x1] %v12
  $region1: #{mlp_classifier_forward.1} parent=0
    #allocation3 [shape = 'u8[4096]{0}', space=vmem, size = 0x1000, scoped, tag = 'input window, operand 0, single buffered']
    #allocation4 [shape = 's32[1]{0}', space=sflag, size = 0x4, scoped, tag = 'scoped memory for mlp_classifier_forward.1']
    #allocation5 [shape = 'u8[8192]{0}', space=vmem, size = 0x2000, scoped, tag = 'input window, operand 1, single buffered']
    #allocation6 [shape = 's32[1]{0}', space=sflag, size = 0x4, scoped, tag = 'scoped memory for mlp_classifier_forward.1']
    #allocation7 [shape = 'u8[32768]{0}', space=vmem, size = 0x8000, scoped, tag = 'input window, operand 3, single buffered']
    %14 = vsyncpa [#allocation4], 0
    %15 = vsyncpa [#allocation6], 0
    // Predicated region
    $region2: #{mlp_classifier_forward.1} parent=1 // pred_check
      _
    $region3: #{mlp_classifier_forward.1} parent=1 // pred_check_branch
      %17 = sbr.rel (0) target = $region5
    $region4: #{mlp_classifier_forward.1} parent=1 // pred_region
      %s19 = ssub.s32 128, 128
      %20 = vsyncadd [#allocation4], %s19
      %s22 = sshll.u32 [#allocation3], 4
      %s23 = int_to_ptr.vmem [resolvable:$true] %s22
      %25 = dma.hbm_to_vmem [thread:$0]  %s0, 128, %s23, [#allocation4]
    $region5: #{mlp_classifier_forward.1} parent=1 // pred_fallthru
      _
    // Predicated region
    $region6: #{mlp_classifier_forward.1} parent=1 // pred_check
      _
    $region7: #{mlp_classifier_forward.1} parent=1 // pred_check_branch
      %27 = sbr.rel (0) target = $region9
    $region8: #{mlp_classifier_forward.1} parent=1 // pred_region
      %s29 = ssub.s32 256, 256
      %30 = vsyncadd [#allocation6], %s29
      %s31 = sshll.u32 [#allocation5], 4
      %s32 = int_to_ptr.vmem [resolvable:$true] %s31
      %37 = dma.hbm_to_vmem [thread:$0]  %s1, 256, %s32, [#allocation6], 64, 64, 4
    $region9: #{mlp_classifier_forward.1} parent=1 // pred_fallthru
      _
    // Predicated region
    $region10: #{mlp_classifier_forward.1} parent=1 // pred_check
      _
    $region11: #{mlp_classifier_forward.1} parent=1 // pred_check_branch
      %39 = sbr.rel (0) target = $region13
    $region12: #{mlp_classifier_forward.1} parent=1 // pred_region
      _
    $region13: #{mlp_classifier_forward.1} parent=1 // pred_fallthru
      _
    // Predicated region
    $region14: #{mlp_classifier_forward.1} parent=1 // pred_check
      _
    $region15: #{mlp_classifier_forward.1} parent=1 // pred_check_branch
      %41 = sbr.rel (0) target = $region17
    $region16: #{mlp_classifier_forward.1} parent=1 // pred_region
      %s43 = ssub.s32 1024, 1024
      %44 = vsyncadd [#allocation6], %s43
      %s45 = sshll.u32 [#allocation7], 4
      %s46 = int_to_ptr.vmem [resolvable:$true] %s45
      %51 = dma.hbm_to_vmem [thread:$0]  %s3, 1024, %s46, [#allocation6], 64, 64, 4
    $region17: #{mlp_classifier_forward.1} parent=1 // pred_fallthru
      _
    // Predicated region
    $region18: #{mlp_classifier_forward.1} parent=1 // pred_check
      _
    $region19: #{mlp_classifier_forward.1} parent=1 // pred_check_branch
      %53 = sbr.rel (0) target = $region21
    $region20: #{mlp_classifier_forward.1} parent=1 // pred_region
      _
    $region21: #{mlp_classifier_forward.1} parent=1 // pred_fallthru
      _
    // Predicated region
    $region22: #{mlp_classifier_forward.1} parent=1 // pred_check
      _
    $region23: #{mlp_classifier_forward.1} parent=1 // pred_check_branch
      %55 = sbr.rel (0) target = $region25
    $region24: #{mlp_classifier_forward.1} parent=1 // pred_region
      _
    $region25: #{mlp_classifier_forward.1} parent=1 // pred_fallthru
      _
    // Predicated region
    $region26: #{mlp_classifier_forward.1} parent=1 // pred_check
      _
    $region27: #{mlp_classifier_forward.1} parent=1 // pred_check_branch
      %57 = sbr.rel (0) target = $region29
    $region28: #{mlp_classifier_forward.1} parent=1 // pred_region
      _
    $region29: #{mlp_classifier_forward.1} parent=1 // pred_fallthru
      _
    // Predicated region
    $region30: #{mlp_classifier_forward.1} parent=1 // pred_check
      _
    $region31: #{mlp_classifier_forward.1} parent=1 // pred_check_branch
      %59 = sbr.rel (0) target = $region33
    $region32: #{mlp_classifier_forward.1} parent=1 // pred_region
      %60 = dma.done [#allocation4], 128
    $region33: #{mlp_classifier_forward.1} parent=1 // pred_fallthru
      _
    // Predicated region
    $region34: #{mlp_classifier_forward.1} parent=1 // pred_check
      _
    $region35: #{mlp_classifier_forward.1} parent=1 // pred_check_branch
      %62 = sbr.rel (0) target = $region37
    $region36: #{mlp_classifier_forward.1} parent=1 // pred_region
      %63 = dma.done [#allocation6], 256
    $region37: #{mlp_classifier_forward.1} parent=1 // pred_fallthru
      _
    // Predicated region
    $region38: #{mlp_classifier_forward.1} parent=1 // pred_check
      _
    $region39: #{mlp_classifier_forward.1} parent=1 // pred_check_branch
      %65 = sbr.rel (0) target = $region41
    $region40: #{mlp_classifier_forward.1} parent=1 // pred_region
      %66 = dma.done [#allocation6], 1024
    $region41: #{mlp_classifier_forward.1} parent=1 // pred_fallthru
      _
    %v68 = vld [vmem:[#allocation3] sm:$0xff]
    %v69 = vpack.c.bf16 %v68, %v68
    %v70 = vld [vmem:[#allocation5] sm:$0xf]
    %v71 = vld [vmem:[#allocation5 + $0x4] sm:$0xf]
    %v72 = vld [vmem:[#allocation5 + $0x8] sm:$0xf]
    %v73 = vld [vmem:[#allocation5 + $0xc] sm:$0xf]
    %v74 = vld [vmem:[%s2] sm:$0x1]
    %v76 = vlaneseq
    %v77 = vshrl.u32 %v76, 7
    %v78 = vsub.s32 0, %v77
    %v79 = vrot.slane %v74, %v78
    %v85 = vunpack.c.l.b16 %v70
    %v86 = vunpack.c.l.b16 %v71
    %v87 = vunpack.c.l.b16 %v72
    %v88 = vunpack.c.l.b16 %v73
    %v89 = vpack.c.b16 %v86, %v85
    %v90 = vpack.c.b16 %v88, %v87
    %vm93 = vcmask 261120
    %v95 = vsel %vm93, %v69, 0
    %97 = vmatprep.subr.bf16.mxu0 0
    %98 = vmatpush1.bf16.msra.mxu0 0
    %99 = vmatprep.subr.bf16.mxu0 0
    %100 = vmatpush1.bf16.msra.mxu0 0
    %101 = vmatprep.subr.bf16.mxu0 0
    %102 = vmatpush1.bf16.msra.mxu0 0
    %103 = vmatprep.subr.bf16.mxu0 0
    %104 = vmatpush1.bf16.msra.mxu0 0
    %105 = vmatprep.subr.bf16.mxu0 0
    %106 = vmatpush1.bf16.msra.mxu0 0
    %107 = vmatprep.subr.bf16.mxu0 0
    %108 = vmatpush1.bf16.msra.mxu0 0
    %109 = vmatprep.subr.bf16.mxu0 0
    %110 = vmatpush1.bf16.msra.mxu0 %v90
    %111 = vmatprep.subr.bf16.mxu0 0
    %112 = vmatpush1.bf16.msra.mxu0 %v89
    %113 = vmatprep.subr.bf16.mxu0 0
    %114 = vmatpush2.bf16.msra.mxu0 0
    %115 = vmatprep.subr.bf16.mxu0 0
    %116 = vmatpush2.bf16.msra.mxu0 0
    %117 = vmatprep.subr.bf16.mxu0 0
    %118 = vmatpush2.bf16.msra.mxu0 0
    %119 = vmatprep.subr.bf16.mxu0 0
    %120 = vmatpush2.bf16.msra.mxu0 0
    %121 = vmatprep.subr.bf16.mxu0 0
    %122 = vmatpush2.bf16.msra.mxu0 0
    %123 = vmatprep.subr.bf16.mxu0 0
    %124 = vmatpush2.bf16.msra.mxu0 0
    %125 = vmatprep.subr.bf16.mxu0 0
    %126 = vmatpush2.bf16.msra.mxu0 0
    %127 = vmatprep.subr.bf16.mxu0 0
    %128 = vmatpush2.bf16.msra.mxu0 0
    %129 = vmatprep.mubr.bf16.mxu0 0
    %130 = vmatmul.mubr.bf16.gmra.mxu0 %v95
    %v131 = vpop.f32.mrf.mxu0
    %v132 = vadd.f32 %v79, %v131
    %v133 = vpop.f32.mrf.mxu0
    %v134 = vpop.f32.mrf.mxu0
    %v135 = vpop.f32.mrf.mxu0
    %136 = vdwg.mxu0
    %v137 = vmax.f32 %v132, 0.0
    %v138 = vpack.c.bf16 %v137, %v137
    %v139 = vld [vmem:[#allocation7] sm:$0xf]
    %v140 = vld [vmem:[#allocation7 + $0x4] sm:$0xf]
    %v141 = vld [vmem:[#allocation7 + $0x8] sm:$0xf]
    %v142 = vld [vmem:[#allocation7 + $0xc] sm:$0xf]
    %v143 = vld [vmem:[#allocation7 + $0x10] sm:$0xf]
    %v144 = vld [vmem:[#allocation7 + $0x14] sm:$0xf]
    %v145 = vld [vmem:[#allocation7 + $0x18] sm:$0xf]
    %v146 = vld [vmem:[#allocation7 + $0x1c] sm:$0xf]
    %v147 = vld [vmem:[#allocation7 + $0x20] sm:$0xf]
    %v148 = vld [vmem:[#allocation7 + $0x24] sm:$0xf]
    %v149 = vld [vmem:[#allocation7 + $0x28] sm:$0xf]
    %v150 = vld [vmem:[#allocation7 + $0x2c] sm:$0xf]
    %v151 = vld [vmem:[#allocation7 + $0x30] sm:$0xf]
    %v152 = vld [vmem:[#allocation7 + $0x34] sm:$0xf]
    %v153 = vld [vmem:[#allocation7 + $0x38] sm:$0xf]
    %v154 = vld [vmem:[#allocation7 + $0x3c] sm:$0xf]
    %v155 = vld [vmem:[%s4] sm:$0x1]
    %v157 = vlaneseq
    %v158 = vshrl.u32 %v157, 7
    %v159 = vsub.s32 0, %v158
    %v160 = vrot.slane %v155, %v159
    %v178 = vunpack.c.l.b16 %v139
    %v179 = vunpack.c.l.b16 %v140
    %v180 = vunpack.c.l.b16 %v141
    %v181 = vunpack.c.l.b16 %v142
    %v182 = vunpack.c.l.b16 %v143
    %v183 = vunpack.c.l.b16 %v144
    %v184 = vunpack.c.l.b16 %v145
    %v185 = vunpack.c.l.b16 %v146
    %v186 = vunpack.c.l.b16 %v147
    %v187 = vunpack.c.l.b16 %v148
    %v188 = vunpack.c.l.b16 %v149
    %v189 = vunpack.c.l.b16 %v150
    %v190 = vunpack.c.l.b16 %v151
    %v191 = vunpack.c.l.b16 %v152
    %v192 = vunpack.c.l.b16 %v153
    %v193 = vunpack.c.l.b16 %v154
    %v194 = vpack.c.b16 %v179, %v178
    %v195 = vpack.c.b16 %v181, %v180
    %v196 = vpack.c.b16 %v183, %v182
    %v197 = vpack.c.b16 %v185, %v184
    %v198 = vpack.c.b16 %v187, %v186
    %v199 = vpack.c.b16 %v189, %v188
    %v200 = vpack.c.b16 %v191, %v190
    %v201 = vpack.c.b16 %v193, %v192
    %210 = vmatprep.subr.bf16.mxu0 0
    %211 = vmatpush1.bf16.msra.mxu0 %v201
    %212 = vmatprep.subr.bf16.mxu0 0
    %213 = vmatpush1.bf16.msra.mxu0 %v200
    %214 = vmatprep.subr.bf16.mxu0 0
    %215 = vmatpush1.bf16.msra.mxu0 %v199
    %216 = vmatprep.subr.bf16.mxu0 0
    %217 = vmatpush1.bf16.msra.mxu0 %v198
    %218 = vmatprep.subr.bf16.mxu0 0
    %219 = vmatpush1.bf16.msra.mxu0 %v197
    %220 = vmatprep.subr.bf16.mxu0 0
    %221 = vmatpush1.bf16.msra.mxu0 %v196
    %222 = vmatprep.subr.bf16.mxu0 0
    %223 = vmatpush1.bf16.msra.mxu0 %v195
    %224 = vmatprep.subr.bf16.mxu0 0
    %225 = vmatpush1.bf16.msra.mxu0 %v194
    %226 = vmatprep.subr.bf16.mxu0 0
    %227 = vmatpush2.bf16.msra.mxu0 0
    %228 = vmatprep.subr.bf16.mxu0 0
    %229 = vmatpush2.bf16.msra.mxu0 0
    %230 = vmatprep.subr.bf16.mxu0 0
    %231 = vmatpush2.bf16.msra.mxu0 0
    %232 = vmatprep.subr.bf16.mxu0 0
    %233 = vmatpush2.bf16.msra.mxu0 0
    %234 = vmatprep.subr.bf16.mxu0 0
    %235 = vmatpush2.bf16.msra.mxu0 0
    %236 = vmatprep.subr.bf16.mxu0 0
    %237 = vmatpush2.bf16.msra.mxu0 0
    %238 = vmatprep.subr.bf16.mxu0 0
    %239 = vmatpush2.bf16.msra.mxu0 0
    %240 = vmatprep.subr.bf16.mxu0 0
    %241 = vmatpush2.bf16.msra.mxu0 0
    %242 = vmatprep.mubr.bf16.mxu0 0
    %243 = vmatmul.mubr.bf16.gmra.mxu0 %v138
    %v244 = vpop.f32.mrf.mxu0
    %v245 = vadd.f32 %v160, %v244
    %v246 = vpop.f32.mrf.mxu0
    %v247 = vpop.f32.mrf.mxu0
    %v248 = vpop.f32.mrf.mxu0
    %249 = vdwg.mxu0
    %v250 = vmax.f32 %v245, 0.0
    %v251 = vld [vmem:[%s5] sm:$0x1]
    %v253 = vlaneseq
    %v254 = vshrl.u32 %v253, 7
    %v255 = vsub.s32 0, %v254
    %v256 = vrot.slane %v251, %v255
    %v258 = vmul.f32 %v250, %v256
    %259 = vadd.xlane.f32.xlu0 %v258
    %v260 = vpop.xlane.xlu0 %259
    %v261 = vld [vmem:[#allocation2] sm:$0x1]
    %v263 = vlaneseq
    %v264 = vshrl.u32 %v263, 7
    %v265 = vsub.s32 0, %v264
    %v266 = vrot.slane %v261, %v265
    %v268 = vadd.f32 %v260, %v266
    %vm269 = vcmask 7168
    %270 = vst.msk [vmem:[%s7] sm:$0xff] %vm269, %v268
    // Predicated region
    $region42: #{mlp_classifier_forward.1} parent=1 // pred_check
      _
    $region43: #{mlp_classifier_forward.1} parent=1 // pred_check_branch
      %272 = sbr.rel (0) target = $region45
    $region44: #{mlp_classifier_forward.1} parent=1 // pred_region
      _
    $region45: #{mlp_classifier_forward.1} parent=1 // pred_fallthru
      _
    // Predicated region
    $region46: #{mlp_classifier_forward.1} parent=1 // pred_check
      _
    $region47: #{mlp_classifier_forward.1} parent=1 // pred_check_branch
      %274 = sbr.rel (0) target = $region49
    $region48: #{mlp_classifier_forward.1} parent=1 // pred_region
      _
    $region49: #{mlp_classifier_forward.1} parent=1 // pred_fallthru
      _
    %275 = vsyncpa [#allocation4], 1
    %276 = vsyncpa [#allocation6], 1

</llo_original>
